<compile_context>
chip_gen: v7x
topology: tpu7x:2x2x1
jax: 0.10.0
libtpu: 0.0.40
codegen_flags: <defaults>
</compile_context>

<pallas_src>
import jax
import jax.numpy as jnp
from jax.experimental import pallas as pl
from jax.experimental.pallas import tpu as pltpu


def attentive_pooling_kernel(x_ref, w1_ref, b1_ref, w2_ref, o_ref,
                             m_sc, l_sc, acc_sc):
    t_idx = pl.program_id(1)

    @pl.when(t_idx == 0)
    def _init():
        m_sc[...] = jnp.full(m_sc.shape, -jnp.inf, m_sc.dtype)
        l_sc[...] = jnp.zeros(l_sc.shape, l_sc.dtype)
        acc_sc[...] = jnp.zeros(acc_sc.shape, acc_sc.dtype)

    x = x_ref[...]                                   # [B_TILE, T_TILE, F]
    bt, tt, f = x.shape
    x_f32 = x.astype(jnp.float32)                    # single upcast per tile

    # ---- attention MLP ----------------------------------------------------
    # First Linear + tanh: one MXU matmul over all bt*tt rows of the tile
    # (leading-dim collapse reshape is layout-free).
    h = jnp.tanh(
        jnp.dot(x.reshape(bt * tt, f), w1_ref[...],
                preferred_element_type=jnp.float32)
        + b1_ref[...]                                # [1, H] broadcasts over rows
    )                                                # [bt*tt, H] f32

    # Second Linear has output width 1 -> VPU multiply + lane reduce (no MXU).
    # b2 is omitted: softmax(s + c) == softmax(s).
    scores = jnp.sum(h.reshape(bt, tt, -1) * w2_ref[...],
                     axis=-1, keepdims=True)         # [bt, tt, 1]

    # ---- streaming (online) softmax over the time grid axis ----------------
    m_prev = m_sc[...]                               # [bt, 1, 1]
    m_new = jnp.maximum(m_prev, jnp.max(scores, axis=1, keepdims=True))
    alpha = jnp.exp(m_prev - m_new)                  # rescales prior partials
    p = jnp.exp(scores - m_new)                      # [bt, tt, 1]

    l_sc[...] = alpha * l_sc[...] + jnp.sum(p, axis=1, keepdims=True)
    acc_sc[...] = alpha * acc_sc[...] + jnp.sum(x_f32 * p, axis=1, keepdims=True)
    m_sc[...] = m_new

    @pl.when(t_idx == pl.num_programs(1) - 1)
    def _finalize():
        # exact reciprocal: outputs are checked to 1e-5
        inv_l = pl.reciprocal(l_sc[...], approx=False)   # [bt, 1, 1]
        o_ref[...] = (acc_sc[...] * inv_l).astype(o_ref.dtype)


def _pick_tile(full, target, align=1):
    """Largest divisor of `full` that is <= target and (a multiple of `align`
    or equal to `full`) -- keeps block shapes layout-legal."""
    valid = [d for d in range(1, full + 1)
             if full % d == 0 and (d % align == 0 or d == full)]
    fitting = [d for d in valid if d <= target]
    return max(fitting) if fitting else min(valid)


def attentive_pooling(x, w1, b1, w2, b2=None, *, b_tile=None, t_tile=None):
    """x: [B, T, F]; w1: [F, H]; b1: [H]/[1,H]; w2: [1,H]/[H,1] -> [B, F]."""
    B, T, F = x.shape
    H = w1.shape[1]
    itemsize = jnp.dtype(x.dtype).itemsize

    b1_row = jnp.asarray(b1).reshape(1, H)
    w2_row = jnp.asarray(w2).reshape(1, H)   # second Linear as a row vector
    del b2                                   # softmax(s + b2) == softmax(s)

    if b_tile is None:
        b_tile = _pick_tile(B, 8)            # a few batch rows per grid step
    if t_tile is None:
        row_target = max(8, 512 // b_tile)   # aim ~512 MXU M-rows per step
        byte_cap = max(8, (4 * 1024 * 1024) // max(1, b_tile * F * itemsize))
        t_tile = _pick_tile(T, min(row_target, byte_cap), align=8)
    assert B % b_tile == 0 and T % t_tile == 0, (b_tile, t_tile)
    # TODO(synk): for T with no multiple-of-8 divisor, pad T in the wrapper and
    # mask padded scores to -inf instead of falling back to t_tile == T.

    # VMEM budget (double-buffered x blocks + resident weights/output/scratch),
    # re-derived per tile so the same code stays inside v7x's smaller VMEM.
    x_block = b_tile * t_tile * F * itemsize
    resident = (F * H + 2 * H) * 4 + b_tile * F * (itemsize + 4) + b_tile * 8
    vmem_limit = int(min(48 * 1024 * 1024,
                         max(16 * 1024 * 1024, 4 * x_block + 4 * resident)))

    grid = (B // b_tile, T // t_tile)
    out = pl.pallas_call(
        attentive_pooling_kernel,
        out_shape=jax.ShapeDtypeStruct((B, 1, F), x.dtype),
        grid_spec=pltpu.PrefetchScalarGridSpec(
            num_scalar_prefetch=0,
            grid=grid,
            in_specs=[
                pl.BlockSpec((b_tile, t_tile, F), lambda b, t: (b, t, 0)),  # x
                pl.BlockSpec((F, H), lambda b, t: (0, 0)),                  # w1 (resident)
                pl.BlockSpec((1, H), lambda b, t: (0, 0)),                  # b1
                pl.BlockSpec((1, H), lambda b, t: (0, 0)),                  # w2 row
            ],
            out_specs=pl.BlockSpec((b_tile, 1, F), lambda b, t: (b, 0, 0)),
            scratch_shapes=[
                pltpu.VMEM((b_tile, 1, 1), jnp.float32),   # running max
                pltpu.VMEM((b_tile, 1, 1), jnp.float32),   # running denom
                pltpu.VMEM((b_tile, 1, F), jnp.float32),   # running weighted sum
            ],
        ),
        compiler_params=pltpu.CompilerParams(
            dimension_semantics=("parallel", "arbitrary"),
            vmem_limit_bytes=vmem_limit,
        ),
    )(x, w1, b1_row, w2_row)
    return out.reshape(B, F)


def reference(x, w1, b1, w2, b2):
    """Pure-JAX reference matching the PyTorch forward exactly (b2 included)."""
    H = w1.shape[1]
    scores = jnp.tanh(x @ w1 + jnp.asarray(b1).reshape(1, H))
    scores = scores @ jnp.asarray(w2).reshape(H, 1) + jnp.asarray(b2).reshape(())
    attn = jax.nn.softmax(scores, axis=1)                 # softmax over time
    return jnp.sum(x * attn, axis=1)                      # [B, F]


if __name__ == "__main__":
    key = jax.random.PRNGKey(0)
    B, T, F_DIM = 4, 32, 32
    H = F_DIM // 2

    k_x, k_w1, k_b1, k_w2, k_b2 = jax.random.split(key, 5)

    x = jax.random.normal(k_x, (B, T, F_DIM), dtype=jnp.float32)
    # nn.Linear parameter shapes from the PyTorch module, pre-transposed for
    # row-major matmul in the kernel.
    w1 = (jax.random.normal(k_w1, (H, F_DIM), dtype=jnp.float32) * 0.1).T   # [F, H]
    b1 = jax.random.normal(k_b1, (H,), dtype=jnp.float32) * 0.1             # [H]
    w2 = jax.random.normal(k_w2, (1, H), dtype=jnp.float32) * 0.1           # [1, H]
    b2 = jax.random.normal(k_b2, (1,), dtype=jnp.float32) * 0.1             # [1]

    ref = reference(x, w1, b1, w2, b2)

    # 1) default tiling (whole T per step at this toy size).
    out = jax.block_until_ready(attentive_pooling(x, w1, b1, w2, b2))
    assert out.shape == (B, F_DIM), out.shape
    err = jnp.max(jnp.abs(out - ref))
    assert jnp.allclose(out, ref, atol=1e-5, rtol=1e-5), f"default tiling err={err}"

    # 2) explicit small tiles: exercises online-softmax accumulation across
    #    multiple time-grid steps AND multiple batch-grid steps.
    out2 = jax.block_until_ready(
        attentive_pooling(x, w1, b1, w2, b2, b_tile=2, t_tile=8))
    err2 = jnp.max(jnp.abs(out2 - ref))
    assert jnp.allclose(out2, ref, atol=1e-5, rtol=1e-5), f"tiled err={err2}"

    print("KERNEL_OK")
</pallas_src>

<mosaic_0001>
module attributes {stable_mosaic.version = 11 : i64} {
  func.func @attentive_pooling_kernel(%arg0: i32, %arg1: i32, %arg2: memref<4x32x32xf32, #tpu.memory_space<vmem>>, %arg3: memref<32x16xf32, #tpu.memory_space<vmem>>, %arg4: memref<1x16xf32, #tpu.memory_space<vmem>>, %arg5: memref<1x16xf32, #tpu.memory_space<vmem>>, %arg6: memref<4x1x32xf32, #tpu.memory_space<vmem>>, %arg7: memref<4x1x1xf32, #tpu.memory_space<vmem>>, %arg8: memref<4x1x1xf32, #tpu.memory_space<vmem>>, %arg9: memref<4x1x32xf32, #tpu.memory_space<vmem>>) attributes {dimension_semantics = [#tpu.dimension_semantics<parallel>, #tpu.dimension_semantics<arbitrary>], iteration_bounds = array<i64: 1, 1>, scalar_prefetch = 0 : i64, scratch_operands = 3 : i64, tpu.core_type = #tpu.core_type<tc>, window_params = [{transform_indices = @transform_0, window_bounds = array<i64: 4, 32, 32>}, {pipeline_mode = #tpu.pipeline_mode<synchronous>, transform_indices = @transform_1, window_bounds = array<i64: 32, 16>}, {pipeline_mode = #tpu.pipeline_mode<synchronous>, transform_indices = @transform_2, window_bounds = array<i64: 1, 16>}, {pipeline_mode = #tpu.pipeline_mode<synchronous>, transform_indices = @transform_3, window_bounds = array<i64: 1, 16>}, {transform_indices = @transform_4, window_bounds = array<i64: 4, 1, 32>}]} {
    %c0_i32 = arith.constant 0 : i32
    %0 = arith.cmpi eq, %arg1, %c0_i32 : i32
    %1 = arith.extui %0 : i1 to i32
    %c0_i32_0 = arith.constant 0 : i32
    %2 = arith.cmpi ne, %1, %c0_i32_0 : i32
    scf.if %2 {
      %cst_33 = arith.constant 0xFF800000 : f32
      %46 = vector.broadcast %cst_33 : f32 to vector<4x1x1xf32>
      %c0_34 = arith.constant 0 : index
      %c0_35 = arith.constant 0 : index
      %c0_36 = arith.constant 0 : index
      %47 = vector.load %arg7[%c0_34, %c0_35, %c0_36] : memref<4x1x1xf32, #tpu.memory_space<vmem>>, vector<4x1x1xf32>
      tpu.vector_store %arg7[%c0_34, %c0_35, %c0_36], %46 {strides = array<i32>} : memref<4x1x1xf32, #tpu.memory_space<vmem>>, vector<4x1x1xf32>,
      %cst_37 = arith.constant 0.000000e+00 : f32
      %48 = vector.broadcast %cst_37 : f32 to vector<4x1x1xf32>
      %c0_38 = arith.constant 0 : index
      %c0_39 = arith.constant 0 : index
      %c0_40 = arith.constant 0 : index
      %49 = vector.load %arg8[%c0_38, %c0_39, %c0_40] : memref<4x1x1xf32, #tpu.memory_space<vmem>>, vector<4x1x1xf32>
      tpu.vector_store %arg8[%c0_38, %c0_39, %c0_40], %48 {strides = array<i32>} : memref<4x1x1xf32, #tpu.memory_space<vmem>>, vector<4x1x1xf32>,
      %cst_41 = arith.constant 0.000000e+00 : f32
      %50 = vector.broadcast %cst_41 : f32 to vector<4x1x32xf32>
      %c0_42 = arith.constant 0 : index
      %c0_43 = arith.constant 0 : index
      %c0_44 = arith.constant 0 : index
      %51 = vector.load %arg9[%c0_42, %c0_43, %c0_44] : memref<4x1x32xf32, #tpu.memory_space<vmem>>, vector<4x1x32xf32>
      tpu.vector_store %arg9[%c0_42, %c0_43, %c0_44], %50 {strides = array<i32>} : memref<4x1x32xf32, #tpu.memory_space<vmem>>, vector<4x1x32xf32>,
    } else {
    }
    %c0 = arith.constant 0 : index
    %c0_1 = arith.constant 0 : index
    %c0_2 = arith.constant 0 : index
    %3 = vector.load %arg2[%c0, %c0_1, %c0_2] : memref<4x32x32xf32, #tpu.memory_space<vmem>>, vector<4x32x32xf32>
    %4 = vector.shape_cast %3 : vector<4x32x32xf32> to vector<128x32xf32>
    %c0_3 = arith.constant 0 : index
    %c0_4 = arith.constant 0 : index
    %5 = vector.load %arg3[%c0_3, %c0_4] : memref<32x16xf32, #tpu.memory_space<vmem>>, vector<32x16xf32>
    %cst = arith.constant dense<0.000000e+00> : vector<128x16xf32>
    %6 = tpu.matmul %4, %5, %cst {dimension_numbers = #tpu.dot_dimension_numbers<[1], [0], [0], [1], [0, 0, 1, 1], [], []>} : vector<128x32xf32>, vector<32x16xf32>, vector<128x16xf32> -> vector<128x16xf32>
    %c0_5 = arith.constant 0 : index
    %c0_6 = arith.constant 0 : index
    %7 = vector.load %arg4[%c0_5, %c0_6] : memref<1x16xf32, #tpu.memory_space<vmem>>, vector<1x16xf32>
    %8 = vector.broadcast %7 : vector<1x16xf32> to vector<128x16xf32>
    %9 = arith.addf %6, %8 : vector<128x16xf32>
    %10 = math.tanh %9 : vector<128x16xf32>
    %11 = vector.shape_cast %10 : vector<128x16xf32> to vector<4x32x16xf32>
    %c0_7 = arith.constant 0 : index
    %c0_8 = arith.constant 0 : index
    %12 = vector.load %arg5[%c0_7, %c0_8] : memref<1x16xf32, #tpu.memory_space<vmem>>, vector<1x16xf32>
    %13 = vector.shape_cast %12 : vector<1x16xf32> to vector<1x1x16xf32>
    %14 = vector.broadcast %13 : vector<1x1x16xf32> to vector<4x32x16xf32>
    %15 = arith.mulf %11, %14 : vector<4x32x16xf32>
    %cst_9 = arith.constant dense<0.000000e+00> : vector<4x32xf32>
    %16 = vector.multi_reduction <add>, %15, %cst_9 [2] : vector<4x32x16xf32> to vector<4x32xf32>
    %17 = vector.shape_cast %16 : vector<4x32xf32> to vector<4x32x1xf32>
    %c0_10 = arith.constant 0 : index
    %c0_11 = arith.constant 0 : index
    %c0_12 = arith.constant 0 : index
    %18 = vector.load %arg7[%c0_10, %c0_11, %c0_12] : memref<4x1x1xf32, #tpu.memory_space<vmem>>, vector<4x1x1xf32>
    %cst_13 = arith.constant dense<0xFF800000> : vector<4x1xf32>
    %19 = vector.multi_reduction <maximumf>, %17, %cst_13 [1] : vector<4x32x1xf32> to vector<4x1xf32>
    %20 = vector.shape_cast %19 : vector<4x1xf32> to vector<4x1x1xf32>
    %21 = arith.maximumf %18, %20 : vector<4x1x1xf32>
    %22 = arith.subf %18, %21 : vector<4x1x1xf32>
    %23 = math.exp %22 : vector<4x1x1xf32>
    %24 = vector.broadcast %21 : vector<4x1x1xf32> to vector<4x32x1xf32>
    %25 = arith.subf %17, %24 : vector<4x32x1xf32>
    %26 = math.exp %25 : vector<4x32x1xf32>
    %c0_14 = arith.constant 0 : index
    %c0_15 = arith.constant 0 : index
    %c0_16 = arith.constant 0 : index
    %27 = vector.load %arg8[%c0_14, %c0_15, %c0_16] : memref<4x1x1xf32, #tpu.memory_space<vmem>>, vector<4x1x1xf32>
    %28 = arith.mulf %23, %27 : vector<4x1x1xf32>
    %cst_17 = arith.constant dense<0.000000e+00> : vector<4x1xf32>
    %29 = vector.multi_reduction <add>, %26, %cst_17 [1] : vector<4x32x1xf32> to vector<4x1xf32>
    %30 = vector.shape_cast %29 : vector<4x1xf32> to vector<4x1x1xf32>
    %31 = arith.addf %28, %30 : vector<4x1x1xf32>
    %c0_18 = arith.constant 0 : index
    %c0_19 = arith.constant 0 : index
    %c0_20 = arith.constant 0 : index
    %32 = vector.load %arg8[%c0_18, %c0_19, %c0_20] : memref<4x1x1xf32, #tpu.memory_space<vmem>>, vector<4x1x1xf32>
    tpu.vector_store %arg8[%c0_18, %c0_19, %c0_20], %31 {strides = array<i32>} : memref<4x1x1xf32, #tpu.memory_space<vmem>>, vector<4x1x1xf32>,
    %c0_21 = arith.constant 0 : index
    %c0_22 = arith.constant 0 : index
    %c0_23 = arith.constant 0 : index
    %33 = vector.load %arg9[%c0_21, %c0_22, %c0_23] : memref<4x1x32xf32, #tpu.memory_space<vmem>>, vector<4x1x32xf32>
    %34 = vector.broadcast %23 : vector<4x1x1xf32> to vector<4x1x32xf32>
    %35 = arith.mulf %34, %33 : vector<4x1x32xf32>
    %36 = vector.broadcast %26 : vector<4x32x1xf32> to vector<4x32x32xf32>
    %37 = arith.mulf %3, %36 : vector<4x32x32xf32>
    %cst_24 = arith.constant dense<0.000000e+00> : vector<4x32xf32>
    %38 = vector.multi_reduction <add>, %37, %cst_24 [1] : vector<4x32x32xf32> to vector<4x32xf32>
    %39 = vector.shape_cast %38 : vector<4x32xf32> to vector<4x1x32xf32>
    %40 = arith.addf %35, %39 : vector<4x1x32xf32>
    %c0_25 = arith.constant 0 : index
    %c0_26 = arith.constant 0 : index
    %c0_27 = arith.constant 0 : index
    %41 = vector.load %arg9[%c0_25, %c0_26, %c0_27] : memref<4x1x32xf32, #tpu.memory_space<vmem>>, vector<4x1x32xf32>
    tpu.vector_store %arg9[%c0_25, %c0_26, %c0_27], %40 {strides = array<i32>} : memref<4x1x32xf32, #tpu.memory_space<vmem>>, vector<4x1x32xf32>,
    %c0_28 = arith.constant 0 : index
    %c0_29 = arith.constant 0 : index
    %c0_30 = arith.constant 0 : index
    %42 = vector.load %arg7[%c0_28, %c0_29, %c0_30] : memref<4x1x1xf32, #tpu.memory_space<vmem>>, vector<4x1x1xf32>
    tpu.vector_store %arg7[%c0_28, %c0_29, %c0_30], %21 {strides = array<i32>} : memref<4x1x1xf32, #tpu.memory_space<vmem>>, vector<4x1x1xf32>,
    %c0_i32_31 = arith.constant 0 : i32
    %43 = arith.cmpi eq, %arg1, %c0_i32_31 : i32
    %44 = arith.extui %43 : i1 to i32
    %c0_i32_32 = arith.constant 0 : i32
    %45 = arith.cmpi ne, %44, %c0_i32_32 : i32
    scf.if %45 {
      %c0_33 = arith.constant 0 : index
      %c0_34 = arith.constant 0 : index
      %c0_35 = arith.constant 0 : index
      %46 = vector.load %arg8[%c0_33, %c0_34, %c0_35] : memref<4x1x1xf32, #tpu.memory_space<vmem>>, vector<4x1x1xf32>
      %47 = tpu.reciprocal %46 : vector<4x1x1xf32> -> vector<4x1x1xf32>
      %c0_36 = arith.constant 0 : index
      %c0_37 = arith.constant 0 : index
      %c0_38 = arith.constant 0 : index
      %48 = vector.load %arg9[%c0_36, %c0_37, %c0_38] : memref<4x1x32xf32, #tpu.memory_space<vmem>>, vector<4x1x32xf32>
      %49 = vector.broadcast %47 : vector<4x1x1xf32> to vector<4x1x32xf32>
      %50 = arith.mulf %48, %49 : vector<4x1x32xf32>
      %c0_39 = arith.constant 0 : index
      %c0_40 = arith.constant 0 : index
      %c0_41 = arith.constant 0 : index
      %51 = vector.load %arg6[%c0_39, %c0_40, %c0_41] : memref<4x1x32xf32, #tpu.memory_space<vmem>>, vector<4x1x32xf32>
      tpu.vector_store %arg6[%c0_39, %c0_40, %c0_41], %50 {strides = array<i32>} : memref<4x1x32xf32, #tpu.memory_space<vmem>>, vector<4x1x32xf32>,
    } else {
    }
    return
  }
  func.func @transform_0(%arg0: i32, %arg1: i32) -> (i32, i32, i32) {
    %c0_i32 = arith.constant 0 : i32
    %c0_i32_0 = arith.constant 0 : i32
    return %arg0, %arg1, %c0_i32 : i32, i32, i32
  }
  func.func @transform_1(%arg0: i32, %arg1: i32) -> (i32, i32) {
    %c0_i32 = arith.constant 0 : i32
    %c0_i32_0 = arith.constant 0 : i32
    %c0_i32_1 = arith.constant 0 : i32
    return %c0_i32, %c0_i32_0 : i32, i32
  }
  func.func @transform_2(%arg0: i32, %arg1: i32) -> (i32, i32) {
    %c0_i32 = arith.constant 0 : i32
    %c0_i32_0 = arith.constant 0 : i32
    %c0_i32_1 = arith.constant 0 : i32
    return %c0_i32, %c0_i32_0 : i32, i32
  }
  func.func @transform_3(%arg0: i32, %arg1: i32) -> (i32, i32) {
    %c0_i32 = arith.constant 0 : i32
    %c0_i32_0 = arith.constant 0 : i32
    %c0_i32_1 = arith.constant 0 : i32
    return %c0_i32, %c0_i32_0 : i32, i32
  }
  func.func @transform_4(%arg0: i32, %arg1: i32) -> (i32, i32, i32) {
    %c0_i32 = arith.constant 0 : i32
    %c0_i32_0 = arith.constant 0 : i32
    %c0_i32_1 = arith.constant 0 : i32
    return %arg0, %c0_i32, %c0_i32_0 : i32, i32, i32
  }
}

</mosaic_0001>

<llo_original>
// kernel: tpu_custom_call.1
$region0: #{tpu_custom_call.1}
  #allocation0 [shape = 'u32[]', space=smem, size = 0x4, offset = 0x4, fixed_abs, tag = 'smem constant byte address 0x4 - core index']
  #allocation1 [shape = 'u32[144,128]{1,0:T(1,128)}', space=vmem, size = 0x12000, scoped, tag = 'internal scratch']
  #allocation2 [shape = 'f32[4,1,1]{2,1,0:T(1,128)}', space=vmem, size = 0x800, scoped, tag = 'scratch operand']
  #allocation3 [shape = 'f32[4,1,1]{2,1,0:T(1,128)}', space=vmem, size = 0x800, scoped, tag = 'scratch operand']
  #allocation4 [shape = 'f32[4,1,32]{2,1,0:T(1,128)}', space=vmem, size = 0x800, scoped, tag = 'scratch operand']
  %s0 = inlined_call_operand.hbm [shape: f32[4,32,32], index: 0, kind: input, shape index: {}]
  %s1 = inlined_call_operand.vmem [shape: f32[32,16], index: 1, kind: input, shape index: {}]
  %s2 = inlined_call_operand.vmem [shape: f32[1,16], index: 2, kind: input, shape index: {}]
  %s3 = inlined_call_operand.vmem [shape: f32[1,16], index: 3, kind: input, shape index: {}]
  %s4 = inlined_call_operand.hbm [shape: f32[4,1,32], index: 4, kind: output, shape index: {}]
  %s5 = sld [smem:[#allocation0]]
  $region38: #{tpu_custom_call.1} parent=0
    _
  %s7 = ssub.s32 1, %s5
  %s8 = scalar_select 0, %s7, %s5
  $region1: #{tpu_custom_call.1} parent=0
    #allocation5 [shape = 'u8[65536]{0}', space=vmem, size = 0x10000, scoped, tag = 'input window, operand 0, single buffered']
    #allocation6 [shape = 's32[1]{0}', space=sflag, size = 0x4, scoped, tag = 'scoped memory for tpu_custom_call.1']
    #allocation7 [shape = 's32[1]{0}', space=sflag, size = 0x4, scoped, tag = 'scoped memory for tpu_custom_call.1']
    #allocation8 [shape = 'u8[2048]{0}', space=vmem, size = 0x800, scoped, tag = 'output window, operand 0, single buffered']
    %9 = vsyncpa [#allocation6], 0
    %10 = vsyncpa [#allocation7], 0
    // Predicated region
    $region2: #{tpu_custom_call.1} parent=1 // pred_check
      _
    $region3: #{tpu_custom_call.1} parent=1 // pred_check_branch
      %12 = sbr.rel (0) target = $region5
    $region4: #{tpu_custom_call.1} parent=1 // pred_region
      %s14 = ssub.s32 2048, 2048
      %15 = vsyncadd [#allocation6], %s14
      %s16 = sshll.u32 [#allocation5], 4
      %s17 = int_to_ptr.vmem [resolvable:$true] %s16
      %22 = dma.hbm_to_vmem [thread:$0]  %s0, 2048, %s17, [#allocation6], 128, 128, 8
    $region5: #{tpu_custom_call.1} parent=1 // pred_fallthru
      _
    // Predicated region
    $region6: #{tpu_custom_call.1} parent=1 // pred_check
      _
    $region7: #{tpu_custom_call.1} parent=1 // pred_check_branch
      %24 = sbr.rel (0) target = $region9
    $region8: #{tpu_custom_call.1} parent=1 // pred_region
      _
    $region9: #{tpu_custom_call.1} parent=1 // pred_fallthru
      _
    // Predicated region
    $region10: #{tpu_custom_call.1} parent=1 // pred_check
      _
    $region11: #{tpu_custom_call.1} parent=1 // pred_check_branch
      %26 = sbr.rel (0) target = $region13
    $region12: #{tpu_custom_call.1} parent=1 // pred_region
      _
    $region13: #{tpu_custom_call.1} parent=1 // pred_fallthru
      _
    // Predicated region
    $region14: #{tpu_custom_call.1} parent=1 // pred_check
      _
    $region15: #{tpu_custom_call.1} parent=1 // pred_check_branch
      %28 = sbr.rel (0) target = $region17
    $region16: #{tpu_custom_call.1} parent=1 // pred_region
      _
    $region17: #{tpu_custom_call.1} parent=1 // pred_fallthru
      _
    // Predicated region
    $region18: #{tpu_custom_call.1} parent=1 // pred_check
      _
    $region19: #{tpu_custom_call.1} parent=1 // pred_check_branch
      %30 = sbr.rel (0) target = $region21
    $region20: #{tpu_custom_call.1} parent=1 // pred_region
      %31 = dma.done [#allocation6], 2048
    $region21: #{tpu_custom_call.1} parent=1 // pred_fallthru
      _
    %p32 = scmp.eq.s32.totalorder 0, 0
    // Predicated region
    $region22: #{tpu_custom_call.1} parent=1 // pred_check
      %p33 = pneg %p32
    $region23: #{tpu_custom_call.1} parent=1 // pred_check_branch
      %35 = sbr.rel (%p33) target = $region25
    $region24: #{tpu_custom_call.1} parent=1 // pred_region
      %vm36 = vcmask 0
      %37 = vst.msk [vmem:[#allocation2] sm:$0x1] %vm36, -inf
      %38 = vst.msk [vmem:[#allocation2 + $0x1] sm:$0x1] %vm36, -inf
      %39 = vst.msk [vmem:[#allocation2 + $0x2] sm:$0x1] %vm36, -inf
      %40 = vst.msk [vmem:[#allocation2 + $0x3] sm:$0x1] %vm36, -inf
      %41 = vst.msk [vmem:[#allocation3] sm:$0x1] %vm36, 0.0
      %42 = vst.msk [vmem:[#allocation3 + $0x1] sm:$0x1] %vm36, 0.0
      %43 = vst.msk [vmem:[#allocation3 + $0x2] sm:$0x1] %vm36, 0.0
      %44 = vst.msk [vmem:[#allocation3 + $0x3] sm:$0x1] %vm36, 0.0
      %vm45 = vcmask 253952
      %46 = vst.msk [vmem:[#allocation4] sm:$0x1] %vm45, 0.0
      %47 = vst.msk [vmem:[#allocation4 + $0x1] sm:$0x1] %vm45, 0.0
      %48 = vst.msk [vmem:[#allocation4 + $0x2] sm:$0x1] %vm45, 0.0
      %49 = vst.msk [vmem:[#allocation4 + $0x3] sm:$0x1] %vm45, 0.0
    $region25: #{tpu_custom_call.1} parent=1 // pred_fallthru
      _
    %v50 = vld [vmem:[#allocation5] sm:$0xff]
    %v51 = vld [vmem:[#allocation5 + $0x8] sm:$0xff]
    %v52 = vld [vmem:[#allocation5 + $0x10] sm:$0xff]
    %v53 = vld [vmem:[#allocation5 + $0x18] sm:$0xff]
    %v54 = vld [vmem:[#allocation5 + $0x20] sm:$0xff]
    %v55 = vld [vmem:[#allocation5 + $0x28] sm:$0xff]
    %v56 = vld [vmem:[#allocation5 + $0x30] sm:$0xff]
    %v57 = vld [vmem:[#allocation5 + $0x38] sm:$0xff]
    %v58 = vld [vmem:[#allocation5 + $0x40] sm:$0xff]
    %v59 = vld [vmem:[#allocation5 + $0x48] sm:$0xff]
    %v60 = vld [vmem:[#allocation5 + $0x50] sm:$0xff]
    %v61 = vld [vmem:[#allocation5 + $0x58] sm:$0xff]
    %v62 = vld [vmem:[#allocation5 + $0x60] sm:$0xff]
    %v63 = vld [vmem:[#allocation5 + $0x68] sm:$0xff]
    %v64 = vld [vmem:[#allocation5 + $0x70] sm:$0xff]
    %v65 = vld [vmem:[#allocation5 + $0x78] sm:$0xff]
    %v66 = vld [vmem:[%s1] sm:$0xff]
    %v67 = vld [vmem:[%s1 + $0x8] sm:$0xff]
    %v68 = vld [vmem:[%s1 + $0x10] sm:$0xff]
    %v69 = vld [vmem:[%s1 + $0x18] sm:$0xff]
    %v70 = vld [vmem:[%s2] sm:$0x1]
    %v72 = vlaneseq
    %v73 = vshrl.u32 %v72, 7
    %v74 = vsub.s32 0, %v73
    %v75 = vrot.slane %v70, %v74
    %vm77 = vcmask 261120
    %v79 = vsel %vm77, %v50, 0
    %v82 = vsel %vm77, %v51, 0
    %v85 = vsel %vm77, %v52, 0
    %v88 = vsel %vm77, %v53, 0
    %v91 = vsel %vm77, %v54, 0
    %v94 = vsel %vm77, %v55, 0
    %v97 = vsel %vm77, %v56, 0
    %v100 = vsel %vm77, %v57, 0
    %v103 = vsel %vm77, %v58, 0
    %v106 = vsel %vm77, %v59, 0
    %v109 = vsel %vm77, %v60, 0
    %v112 = vsel %vm77, %v61, 0
    %v115 = vsel %vm77, %v62, 0
    %v118 = vsel %vm77, %v63, 0
    %v121 = vsel %vm77, %v64, 0
    %v124 = vsel %vm77, %v65, 0
    %126 = vmatprep.subr.mxu0 0.0
    %127 = vmatpush1.msra.mxu0 %v66
    %128 = vmatprep.subr.mxu0 0.0
    %129 = vmatpush1.msra.mxu0 %v67
    %130 = vmatprep.subr.mxu0 0.0
    %131 = vmatpush1.msra.mxu0 %v68
    %132 = vmatprep.subr.mxu0 0.0
    %133 = vmatpush1.msra.mxu0 %v69
    %134 = vmatprep.subr.mxu0 0.0
    %135 = vmatpush1.msra.mxu0 0.0
    %136 = vmatprep.subr.mxu0 0.0
    %137 = vmatpush1.msra.mxu0 0.0
    %138 = vmatprep.subr.mxu0 0.0
    %139 = vmatpush1.msra.mxu0 0.0
    %140 = vmatprep.subr.mxu0 0.0
    %141 = vmatpush1.msra.mxu0 0.0
    %142 = vmatprep.subr.mxu0 0.0
    %143 = vmatpush1.msra.mxu0 0.0
    %144 = vmatprep.subr.mxu0 0.0
    %145 = vmatpush1.msra.mxu0 0.0
    %146 = vmatprep.subr.mxu0 0.0
    %147 = vmatpush1.msra.mxu0 0.0
    %148 = vmatprep.subr.mxu0 0.0
    %149 = vmatpush1.msra.mxu0 0.0
    %150 = vmatprep.subr.mxu0 0.0
    %151 = vmatpush1.msra.mxu0 0.0
    %152 = vmatprep.subr.mxu0 0.0
    %153 = vmatpush1.msra.mxu0 0.0
    %154 = vmatprep.subr.mxu0 0.0
    %155 = vmatpush1.msra.mxu0 0.0
    %156 = vmatprep.subr.mxu0 0.0
    %157 = vmatpush1.msra.mxu0 0.0
    %158 = vmatprep.subr.mxu0 0.0
    %159 = vmatpush1.msra.mxu0 0.0
    %160 = vmatprep.subr.mxu0 0.0
    %161 = vmatpush1.msra.mxu0 0.0
    %162 = vmatprep.subr.mxu0 0.0
    %163 = vmatpush1.msra.mxu0 0.0
    %164 = vmatprep.subr.mxu0 0.0
    %165 = vmatpush1.msra.mxu0 0.0
    %166 = vmatprep.subr.mxu0 0.0
    %167 = vmatpush1.msra.mxu0 0.0
    %168 = vmatprep.subr.mxu0 0.0
    %169 = vmatpush1.msra.mxu0 0.0
    %170 = vmatprep.subr.mxu0 0.0
    %171 = vmatpush1.msra.mxu0 0.0
    %172 = vmatprep.subr.mxu0 0.0
    %173 = vmatpush1.msra.mxu0 0.0
    %174 = vmatprep.subr.mxu0 0.0
    %175 = vmatpush1.msra.mxu0 0.0
    %176 = vmatprep.subr.mxu0 0.0
    %177 = vmatpush1.msra.mxu0 0.0
    %178 = vmatprep.subr.mxu0 0.0
    %179 = vmatpush1.msra.mxu0 0.0
    %180 = vmatprep.subr.mxu0 0.0
    %181 = vmatpush1.msra.mxu0 0.0
    %182 = vmatprep.subr.mxu0 0.0
    %183 = vmatpush1.msra.mxu0 0.0
    %184 = vmatprep.subr.mxu0 0.0
    %185 = vmatpush1.msra.mxu0 0.0
    %186 = vmatprep.subr.mxu0 0.0
    %187 = vmatpush1.msra.mxu0 0.0
    %188 = vmatprep.subr.mxu0 0.0
    %189 = vmatpush1.msra.mxu0 0.0
    %190 = vmatprep.mubr.f32.mxu0 0.0
    %191 = vmatmul.mubr.f32.gmra.mrb[0].mxu0 %v79
    %v192 = vpop.f32.mrb[0].mxu0
    %v193 = vadd.f32 %v75, %v192
    %v194 = vpop.f32.mrb[0].mxu0
    %195 = vmatprep.mubr.f32.mxu0 0.0
    %196 = vmatmul.mubr.f32.gmra.mrb[0].mxu0 %v82
    %v197 = vpop.f32.mrb[0].mxu0
    %v198 = vadd.f32 %v75, %v197
    %v199 = vpop.f32.mrb[0].mxu0
    %200 = vmatprep.mubr.f32.mxu0 0.0
    %201 = vmatmul.mubr.f32.gmra.mrb[0].mxu0 %v85
    %v202 = vpop.f32.mrb[0].mxu0
    %v203 = vadd.f32 %v75, %v202
    %v204 = vpop.f32.mrb[0].mxu0
    %205 = vmatprep.mubr.f32.mxu0 0.0
    %206 = vmatmul.mubr.f32.gmra.mrb[0].mxu0 %v88
    %v207 = vpop.f32.mrb[0].mxu0
    %v208 = vadd.f32 %v75, %v207
    %v209 = vpop.f32.mrb[0].mxu0
    %210 = vmatprep.mubr.f32.mxu0 0.0
    %211 = vmatmul.mubr.f32.gmra.mrb[0].mxu0 %v91
    %v212 = vpop.f32.mrb[0].mxu0
    %v213 = vadd.f32 %v75, %v212
    %v214 = vpop.f32.mrb[0].mxu0
    %215 = vmatprep.mubr.f32.mxu0 0.0
    %216 = vmatmul.mubr.f32.gmra.mrb[0].mxu0 %v94
    %v217 = vpop.f32.mrb[0].mxu0
    %v218 = vadd.f32 %v75, %v217
    %v219 = vpop.f32.mrb[0].mxu0
    %220 = vmatprep.mubr.f32.mxu0 0.0
    %221 = vmatmul.mubr.f32.gmra.mrb[0].mxu0 %v97
    %v222 = vpop.f32.mrb[0].mxu0
    %v223 = vadd.f32 %v75, %v222
    %v224 = vpop.f32.mrb[0].mxu0
    %225 = vmatprep.mubr.f32.mxu0 0.0
    %226 = vmatmul.mubr.f32.gmra.mrb[0].mxu0 %v100
    %v227 = vpop.f32.mrb[0].mxu0
    %v228 = vadd.f32 %v75, %v227
    %v229 = vpop.f32.mrb[0].mxu0
    %230 = vmatprep.mubr.f32.mxu0 0.0
    %231 = vmatmul.mubr.f32.gmra.mrb[0].mxu0 %v103
    %v232 = vpop.f32.mrb[0].mxu0
    %v233 = vadd.f32 %v75, %v232
    %v234 = vpop.f32.mrb[0].mxu0
    %235 = vmatprep.mubr.f32.mxu0 0.0
    %236 = vmatmul.mubr.f32.gmra.mrb[0].mxu0 %v106
    %v237 = vpop.f32.mrb[0].mxu0
    %v238 = vadd.f32 %v75, %v237
    %v239 = vpop.f32.mrb[0].mxu0
    %240 = vmatprep.mubr.f32.mxu0 0.0
    %241 = vmatmul.mubr.f32.gmra.mrb[0].mxu0 %v109
    %v242 = vpop.f32.mrb[0].mxu0
    %v243 = vadd.f32 %v75, %v242
    %v244 = vpop.f32.mrb[0].mxu0
    %245 = vmatprep.mubr.f32.mxu0 0.0
    %246 = vmatmul.mubr.f32.gmra.mrb[0].mxu0 %v112
    %v247 = vpop.f32.mrb[0].mxu0
    %v248 = vadd.f32 %v75, %v247
    %v249 = vpop.f32.mrb[0].mxu0
    %250 = vmatprep.mubr.f32.mxu0 0.0
    %251 = vmatmul.mubr.f32.gmra.mrb[0].mxu0 %v115
    %v252 = vpop.f32.mrb[0].mxu0
    %v253 = vadd.f32 %v75, %v252
    %v254 = vpop.f32.mrb[0].mxu0
    %255 = vmatprep.mubr.f32.mxu0 0.0
    %256 = vmatmul.mubr.f32.gmra.mrb[0].mxu0 %v118
    %v257 = vpop.f32.mrb[0].mxu0
    %v258 = vadd.f32 %v75, %v257
    %v259 = vpop.f32.mrb[0].mxu0
    %260 = vmatprep.mubr.f32.mxu0 0.0
    %261 = vmatmul.mubr.f32.gmra.mrb[0].mxu0 %v121
    %v262 = vpop.f32.mrb[0].mxu0
    %v263 = vadd.f32 %v75, %v262
    %v264 = vpop.f32.mrb[0].mxu0
    %265 = vmatprep.mubr.f32.mxu0 0.0
    %266 = vmatmul.mubr.f32.gmra.mrb[0].mxu0 %v124
    %v267 = vpop.f32.mrb[0].mxu0
    %v268 = vadd.f32 %v75, %v267
    %v269 = vpop.f32.mrb[0].mxu0
    %270 = vdwg.mxu0
    %v271 = vtanh.pop %v193
    %v272 = vtanh.pop %v198
    %v273 = vtanh.pop %v203
    %v274 = vtanh.pop %v208
    %v275 = vtanh.pop %v213
    %v276 = vtanh.pop %v218
    %v277 = vtanh.pop %v223
    %v278 = vtanh.pop %v228
    %v279 = vtanh.pop %v233
    %v280 = vtanh.pop %v238
    %v281 = vtanh.pop %v243
    %v282 = vtanh.pop %v248
    %v283 = vtanh.pop %v253
    %v284 = vtanh.pop %v258
    %v285 = vtanh.pop %v263
    %v286 = vtanh.pop %v268
    %v287 = vld [vmem:[%s3] sm:$0x1]
    %v289 = vlaneseq
    %v290 = vshrl.u32 %v289, 7
    %v291 = vsub.s32 0, %v290
    %v292 = vrot.slane %v287, %v291
    %v294 = vmul.f32 %v271, %v292
    %v295 = vmul.f32 %v272, %v292
    %v296 = vmul.f32 %v273, %v292
    %v297 = vmul.f32 %v274, %v292
    %v298 = vmul.f32 %v275, %v292
    %v299 = vmul.f32 %v276, %v292
    %v300 = vmul.f32 %v277, %v292
    %v301 = vmul.f32 %v278, %v292
    %v302 = vmul.f32 %v279, %v292
    %v303 = vmul.f32 %v280, %v292
    %v304 = vmul.f32 %v281, %v292
    %v305 = vmul.f32 %v282, %v292
    %v306 = vmul.f32 %v283, %v292
    %v307 = vmul.f32 %v284, %v292
    %v308 = vmul.f32 %v285, %v292
    %v309 = vmul.f32 %v286, %v292
    %vm310 = vcmask 130048
    %v311 = vsel %vm310, %v294, 0.0
    %312 = vadd.xlane.f32.xlu0 %v311
    %v313 = vpop.xlane.xlu0 %312
    %v314 = vsel %vm310, %v295, 0.0
    %315 = vadd.xlane.f32.xlu0 %v314
    %v316 = vpop.xlane.xlu0 %315
    %v317 = vsel %vm310, %v296, 0.0
    %318 = vadd.xlane.f32.xlu0 %v317
    %v319 = vpop.xlane.xlu0 %318
    %v320 = vsel %vm310, %v297, 0.0
    %321 = vadd.xlane.f32.xlu0 %v320
    %v322 = vpop.xlane.xlu0 %321
    %v323 = vsel %vm310, %v298, 0.0
    %324 = vadd.xlane.f32.xlu0 %v323
    %v325 = vpop.xlane.xlu0 %324
    %v326 = vsel %vm310, %v299, 0.0
    %327 = vadd.xlane.f32.xlu0 %v326
    %v328 = vpop.xlane.xlu0 %327
    %v329 = vsel %vm310, %v300, 0.0
    %330 = vadd.xlane.f32.xlu0 %v329
    %v331 = vpop.xlane.xlu0 %330
    %v332 = vsel %vm310, %v301, 0.0
    %333 = vadd.xlane.f32.xlu0 %v332
    %v334 = vpop.xlane.xlu0 %333
    %v335 = vsel %vm310, %v302, 0.0
    %336 = vadd.xlane.f32.xlu0 %v335
    %v337 = vpop.xlane.xlu0 %336
    %v338 = vsel %vm310, %v303, 0.0
    %339 = vadd.xlane.f32.xlu0 %v338
    %v340 = vpop.xlane.xlu0 %339
    %v341 = vsel %vm310, %v304, 0.0
    %342 = vadd.xlane.f32.xlu0 %v341
    %v343 = vpop.xlane.xlu0 %342
    %v344 = vsel %vm310, %v305, 0.0
    %345 = vadd.xlane.f32.xlu0 %v344
    %v346 = vpop.xlane.xlu0 %345
    %v347 = vsel %vm310, %v306, 0.0
    %348 = vadd.xlane.f32.xlu0 %v347
    %v349 = vpop.xlane.xlu0 %348
    %v350 = vsel %vm310, %v307, 0.0
    %351 = vadd.xlane.f32.xlu0 %v350
    %v352 = vpop.xlane.xlu0 %351
    %v353 = vsel %vm310, %v308, 0.0
    %354 = vadd.xlane.f32.xlu0 %v353
    %v355 = vpop.xlane.xlu0 %354
    %v356 = vsel %vm310, %v309, 0.0
    %357 = vadd.xlane.f32.xlu0 %v356
    %v358 = vpop.xlane.xlu0 %357
    %v359 = vld [vmem:[#allocation2] sm:$0x1]
    %v360 = vld [vmem:[#allocation2 + $0x1] sm:$0x1]
    %v361 = vld [vmem:[#allocation2 + $0x2] sm:$0x1]
    %v362 = vld [vmem:[#allocation2 + $0x3] sm:$0x1]
    %v363 = vmax.f32 %v313, %v316
    %v364 = vmax.f32 %v363, %v319
    %v365 = vmax.f32 %v364, %v322
    %v366 = vrot.slane %v365, 4
    %v367 = vmax.f32 %v365, %v366
    %v368 = vrot.slane %v367, 2
    %v369 = vmax.f32 %v367, %v368
    %v370 = vrot.slane %v369, 1
    %v371 = vmax.f32 %v369, %v370
    %v372 = vmax.f32 %v325, %v328
    %v373 = vmax.f32 %v372, %v331
    %v374 = vmax.f32 %v373, %v334
    %v375 = vrot.slane %v374, 4
    %v376 = vmax.f32 %v374, %v375
    %v377 = vrot.slane %v376, 2
    %v378 = vmax.f32 %v376, %v377
    %v379 = vrot.slane %v378, 1
    %v380 = vmax.f32 %v378, %v379
    %v381 = vmax.f32 %v337, %v340
    %v382 = vmax.f32 %v381, %v343
    %v383 = vmax.f32 %v382, %v346
    %v384 = vrot.slane %v383, 4
    %v385 = vmax.f32 %v383, %v384
    %v386 = vrot.slane %v385, 2
    %v387 = vmax.f32 %v385, %v386
    %v388 = vrot.slane %v387, 1
    %v389 = vmax.f32 %v387, %v388
    %v390 = vmax.f32 %v349, %v352
    %v391 = vmax.f32 %v390, %v355
    %v392 = vmax.f32 %v391, %v358
    %v393 = vrot.slane %v392, 4
    %v394 = vmax.f32 %v392, %v393
    %v395 = vrot.slane %v394, 2
    %v396 = vmax.f32 %v394, %v395
    %v397 = vrot.slane %v396, 1
    %v398 = vmax.f32 %v396, %v397
    %v399 = vmax.f32 %v359, %v371
    %v400 = vmax.f32 %v360, %v380
    %v401 = vmax.f32 %v361, %v389
    %v402 = vmax.f32 %v362, %v398
    %v403 = vsub.f32 %v359, %v399
    %v404 = vsub.f32 %v360, %v400
    %v405 = vsub.f32 %v361, %v401
    %v406 = vsub.f32 %v362, %v402
    %v407 = vmul.f32 %v403, 1.442695
    %v408 = vpow.pop %v407
    %v409 = vmul.f32 %v404, 1.442695
    %v410 = vpow.pop %v409
    %v411 = vmul.f32 %v405, 1.442695
    %v412 = vpow.pop %v411
    %v413 = vmul.f32 %v406, 1.442695
    %v414 = vpow.pop %v413
    %v419 = vlaneseq
    %v420 = vshrl.u32 %v419, 7
    %v421 = vsub.s32 0, %v420
    %v422 = vrot.slane %v399, %v421
    %v423 = vlaneseq
    %v424 = vshrl.u32 %v423, 7
    %v425 = vsub.s32 0, %v424
    %v426 = vrot.slane %v400, %v425
    %v427 = vlaneseq
    %v428 = vshrl.u32 %v427, 7
    %v429 = vsub.s32 0, %v428
    %v430 = vrot.slane %v401, %v429
    %v431 = vlaneseq
    %v432 = vshrl.u32 %v431, 7
    %v433 = vsub.s32 0, %v432
    %v434 = vrot.slane %v402, %v433
    %v439 = vsub.f32 %v313, %v422
    %v440 = vsub.f32 %v316, %v422
    %v441 = vsub.f32 %v319, %v422
    %v442 = vsub.f32 %v322, %v422
    %v443 = vsub.f32 %v325, %v426
    %v444 = vsub.f32 %v328, %v426
    %v445 = vsub.f32 %v331, %v426
    %v446 = vsub.f32 %v334, %v426
    %v447 = vsub.f32 %v337, %v430
    %v448 = vsub.f32 %v340, %v430
    %v449 = vsub.f32 %v343, %v430
    %v450 = vsub.f32 %v346, %v430
    %v451 = vsub.f32 %v349, %v434
    %v452 = vsub.f32 %v352, %v434
    %v453 = vsub.f32 %v355, %v434
    %v454 = vsub.f32 %v358, %v434
    %v455 = vmul.f32 %v439, 1.442695
    %v456 = vpow.pop %v455
    %v457 = vmul.f32 %v440, 1.442695
    %v458 = vpow.pop %v457
    %v459 = vmul.f32 %v441, 1.442695
    %v460 = vpow.pop %v459
    %v461 = vmul.f32 %v442, 1.442695
    %v462 = vpow.pop %v461
    %v463 = vmul.f32 %v443, 1.442695
    %v464 = vpow.pop %v463
    %v465 = vmul.f32 %v444, 1.442695
    %v466 = vpow.pop %v465
    %v467 = vmul.f32 %v445, 1.442695
    %v468 = vpow.pop %v467
    %v469 = vmul.f32 %v446, 1.442695
    %v470 = vpow.pop %v469
    %v471 = vmul.f32 %v447, 1.442695
    %v472 = vpow.pop %v471
    %v473 = vmul.f32 %v448, 1.442695
    %v474 = vpow.pop %v473
    %v475 = vmul.f32 %v449, 1.442695
    %v476 = vpow.pop %v475
    %v477 = vmul.f32 %v450, 1.442695
    %v478 = vpow.pop %v477
    %v479 = vmul.f32 %v451, 1.442695
    %v480 = vpow.pop %v479
    %v481 = vmul.f32 %v452, 1.442695
    %v482 = vpow.pop %v481
    %v483 = vmul.f32 %v453, 1.442695
    %v484 = vpow.pop %v483
    %v485 = vmul.f32 %v454, 1.442695
    %v486 = vpow.pop %v485
    %v487 = vld [vmem:[#allocation3] sm:$0x1]
    %v488 = vld [vmem:[#allocation3 + $0x1] sm:$0x1]
    %v489 = vld [vmem:[#allocation3 + $0x2] sm:$0x1]
    %v490 = vld [vmem:[#allocation3 + $0x3] sm:$0x1]
    %v491 = vmul.f32 %v408, %v487
    %v492 = vmul.f32 %v410, %v488
    %v493 = vmul.f32 %v412, %v489
    %v494 = vmul.f32 %v414, %v490
    %vm495 = vcmask 7168
    %v496 = vsel %vm495, %v456, 0.0
    %v497 = vsel %vm495, %v458, 0.0
    %v498 = vadd.f32 %v496, %v497
    %v499 = vsel %vm495, %v460, 0.0
    %v500 = vadd.f32 %v498, %v499
    %v501 = vsel %vm495, %v462, 0.0
    %v502 = vadd.f32 %v500, %v501
    %v503 = vrot.slane %v502, 4
    %v504 = vadd.f32 %v502, %v503
    %v505 = vrot.slane %v504, 2
    %v506 = vadd.f32 %v504, %v505
    %v507 = vrot.slane %v506, 1
    %v508 = vadd.f32 %v506, %v507
    %v509 = vsel %vm495, %v464, 0.0
    %v510 = vsel %vm495, %v466, 0.0
    %v511 = vadd.f32 %v509, %v510
    %v512 = vsel %vm495, %v468, 0.0
    %v513 = vadd.f32 %v511, %v512
    %v514 = vsel %vm495, %v470, 0.0
    %v515 = vadd.f32 %v513, %v514
    %v516 = vrot.slane %v515, 4
    %v517 = vadd.f32 %v515, %v516
    %v518 = vrot.slane %v517, 2
    %v519 = vadd.f32 %v517, %v518
    %v520 = vrot.slane %v519, 1
    %v521 = vadd.f32 %v519, %v520
    %v522 = vsel %vm495, %v472, 0.0
    %v523 = vsel %vm495, %v474, 0.0
    %v524 = vadd.f32 %v522, %v523
    %v525 = vsel %vm495, %v476, 0.0
    %v526 = vadd.f32 %v524, %v525
    %v527 = vsel %vm495, %v478, 0.0
    %v528 = vadd.f32 %v526, %v527
    %v529 = vrot.slane %v528, 4
    %v530 = vadd.f32 %v528, %v529
    %v531 = vrot.slane %v530, 2
    %v532 = vadd.f32 %v530, %v531
    %v533 = vrot.slane %v532, 1
    %v534 = vadd.f32 %v532, %v533
    %v535 = vsel %vm495, %v480, 0.0
    %v536 = vsel %vm495, %v482, 0.0
    %v537 = vadd.f32 %v535, %v536
    %v538 = vsel %vm495, %v484, 0.0
    %v539 = vadd.f32 %v537, %v538
    %v540 = vsel %vm495, %v486, 0.0
    %v541 = vadd.f32 %v539, %v540
    %v542 = vrot.slane %v541, 4
    %v543 = vadd.f32 %v541, %v542
    %v544 = vrot.slane %v543, 2
    %v545 = vadd.f32 %v543, %v544
    %v546 = vrot.slane %v545, 1
    %v547 = vadd.f32 %v545, %v546
    %v548 = vadd.f32 %v491, %v508
    %v549 = vadd.f32 %v492, %v521
    %v550 = vadd.f32 %v493, %v534
    %v551 = vadd.f32 %v494, %v547
    %vm552 = vcmask 0
    %553 = vst.msk [vmem:[#allocation3] sm:$0x1] %vm552, %v548
    %554 = vst.msk [vmem:[#allocation3 + $0x1] sm:$0x1] %vm552, %v549
    %555 = vst.msk [vmem:[#allocation3 + $0x2] sm:$0x1] %vm552, %v550
    %556 = vst.msk [vmem:[#allocation3 + $0x3] sm:$0x1] %vm552, %v551
    %v557 = vld [vmem:[#allocation4] sm:$0x1]
    %v558 = vld [vmem:[#allocation4 + $0x1] sm:$0x1]
    %v559 = vld [vmem:[#allocation4 + $0x2] sm:$0x1]
    %v560 = vld [vmem:[#allocation4 + $0x3] sm:$0x1]
    %562 = vset.pattern.permute.xlu0 0
    %563 = vperm.xlu0 %562, %v408
    %v564 = vpop.permute.xlu0 %563
    %v566 = vlaneseq
    %v567 = vshrl.u32 %v566, 7
    %v568 = vsub.s32 0, %v567
    %v569 = vrot.slane %v564, %v568
    %571 = vset.pattern.permute.xlu0 0
    %572 = vperm.xlu0 %571, %v410
    %v573 = vpop.permute.xlu0 %572
    %v575 = vlaneseq
    %v576 = vshrl.u32 %v575, 7
    %v577 = vsub.s32 0, %v576
    %v578 = vrot.slane %v573, %v577
    %580 = vset.pattern.permute.xlu0 0
    %581 = vperm.xlu0 %580, %v412
    %v582 = vpop.permute.xlu0 %581
    %v584 = vlaneseq
    %v585 = vshrl.u32 %v584, 7
    %v586 = vsub.s32 0, %v585
    %v587 = vrot.slane %v582, %v586
    %589 = vset.pattern.permute.xlu0 0
    %590 = vperm.xlu0 %589, %v414
    %v591 = vpop.permute.xlu0 %590
    %v593 = vlaneseq
    %v594 = vshrl.u32 %v593, 7
    %v595 = vsub.s32 0, %v594
    %v596 = vrot.slane %v591, %v595
    %v597 = vmul.f32 %v569, %v557
    %v598 = vmul.f32 %v578, %v558
    %v599 = vmul.f32 %v587, %v559
    %v600 = vmul.f32 %v596, %v560
    %602 = vset.pattern.permute.xlu0 0
    %603 = vperm.xlu0 %602, %v456
    %v604 = vpop.permute.xlu0 %603
    %607 = vset.pattern.permute.xlu0 0
    %608 = vperm.xlu0 %607, %v458
    %v609 = vpop.permute.xlu0 %608
    %612 = vset.pattern.permute.xlu0 0
    %613 = vperm.xlu0 %612, %v460
    %v614 = vpop.permute.xlu0 %613
    %617 = vset.pattern.permute.xlu0 0
    %618 = vperm.xlu0 %617, %v462
    %v619 = vpop.permute.xlu0 %618
    %622 = vset.pattern.permute.xlu0 0
    %623 = vperm.xlu0 %622, %v464
    %v624 = vpop.permute.xlu0 %623
    %627 = vset.pattern.permute.xlu0 0
    %628 = vperm.xlu0 %627, %v466
    %v629 = vpop.permute.xlu0 %628
    %632 = vset.pattern.permute.xlu0 0
    %633 = vperm.xlu0 %632, %v468
    %v634 = vpop.permute.xlu0 %633
    %637 = vset.pattern.permute.xlu0 0
    %638 = vperm.xlu0 %637, %v470
    %v639 = vpop.permute.xlu0 %638
    %642 = vset.pattern.permute.xlu0 0
    %643 = vperm.xlu0 %642, %v472
    %v644 = vpop.permute.xlu0 %643
    %647 = vset.pattern.permute.xlu0 0
    %648 = vperm.xlu0 %647, %v474
    %v649 = vpop.permute.xlu0 %648
    %652 = vset.pattern.permute.xlu0 0
    %653 = vperm.xlu0 %652, %v476
    %v654 = vpop.permute.xlu0 %653
    %657 = vset.pattern.permute.xlu0 0
    %658 = vperm.xlu0 %657, %v478
    %v659 = vpop.permute.xlu0 %658
    %662 = vset.pattern.permute.xlu0 0
    %663 = vperm.xlu0 %662, %v480
    %v664 = vpop.permute.xlu0 %663
    %667 = vset.pattern.permute.xlu0 0
    %668 = vperm.xlu0 %667, %v482
    %v669 = vpop.permute.xlu0 %668
    %672 = vset.pattern.permute.xlu0 0
    %673 = vperm.xlu0 %672, %v484
    %v674 = vpop.permute.xlu0 %673
    %677 = vset.pattern.permute.xlu0 0
    %678 = vperm.xlu0 %677, %v486
    %v679 = vpop.permute.xlu0 %678
    %v681 = vmul.f32 %v50, %v604
    %v682 = vmul.f32 %v51, %v609
    %v683 = vmul.f32 %v52, %v614
    %v684 = vmul.f32 %v53, %v619
    %v685 = vmul.f32 %v54, %v624
    %v686 = vmul.f32 %v55, %v629
    %v687 = vmul.f32 %v56, %v634
    %v688 = vmul.f32 %v57, %v639
    %v689 = vmul.f32 %v58, %v644
    %v690 = vmul.f32 %v59, %v649
    %v691 = vmul.f32 %v60, %v654
    %v692 = vmul.f32 %v61, %v659
    %v693 = vmul.f32 %v62, %v664
    %v694 = vmul.f32 %v63, %v669
    %v695 = vmul.f32 %v64, %v674
    %v696 = vmul.f32 %v65, %v679
    %v697 = vsel %vm77, %v681, 0.0
    %v698 = vsel %vm77, %v682, 0.0
    %v699 = vadd.f32 %v697, %v698
    %v700 = vsel %vm77, %v683, 0.0
    %v701 = vadd.f32 %v699, %v700
    %v702 = vsel %vm77, %v684, 0.0
    %v703 = vadd.f32 %v701, %v702
    %v704 = vrot.slane %v703, 4
    %v705 = vadd.f32 %v703, %v704
    %v706 = vrot.slane %v705, 2
    %v707 = vadd.f32 %v705, %v706
    %v708 = vrot.slane %v707, 1
    %v709 = vadd.f32 %v707, %v708
    %v710 = vsel %vm77, %v685, 0.0
    %v711 = vsel %vm77, %v686, 0.0
    %v712 = vadd.f32 %v710, %v711
    %v713 = vsel %vm77, %v687, 0.0
    %v714 = vadd.f32 %v712, %v713
    %v715 = vsel %vm77, %v688, 0.0
    %v716 = vadd.f32 %v714, %v715
    %v717 = vrot.slane %v716, 4
    %v718 = vadd.f32 %v716, %v717
    %v719 = vrot.slane %v718, 2
    %v720 = vadd.f32 %v718, %v719
    %v721 = vrot.slane %v720, 1
    %v722 = vadd.f32 %v720, %v721
    %v723 = vsel %vm77, %v689, 0.0
    %v724 = vsel %vm77, %v690, 0.0
    %v725 = vadd.f32 %v723, %v724
    %v726 = vsel %vm77, %v691, 0.0
    %v727 = vadd.f32 %v725, %v726
    %v728 = vsel %vm77, %v692, 0.0
    %v729 = vadd.f32 %v727, %v728
    %v730 = vrot.slane %v729, 4
    %v731 = vadd.f32 %v729, %v730
    %v732 = vrot.slane %v731, 2
    %v733 = vadd.f32 %v731, %v732
    %v734 = vrot.slane %v733, 1
    %v735 = vadd.f32 %v733, %v734
    %v736 = vsel %vm77, %v693, 0.0
    %v737 = vsel %vm77, %v694, 0.0
    %v738 = vadd.f32 %v736, %v737
    %v739 = vsel %vm77, %v695, 0.0
    %v740 = vadd.f32 %v738, %v739
    %v741 = vsel %vm77, %v696, 0.0
    %v742 = vadd.f32 %v740, %v741
    %v743 = vrot.slane %v742, 4
    %v744 = vadd.f32 %v742, %v743
    %v745 = vrot.slane %v744, 2
    %v746 = vadd.f32 %v744, %v745
    %v747 = vrot.slane %v746, 1
    %v748 = vadd.f32 %v746, %v747
    %v749 = vadd.f32 %v597, %v709
    %v750 = vadd.f32 %v598, %v722
    %v751 = vadd.f32 %v599, %v735
    %v752 = vadd.f32 %v600, %v748
    %vm753 = vcmask 253952
    %754 = vst.msk [vmem:[#allocation4] sm:$0x1] %vm753, %v749
    %755 = vst.msk [vmem:[#allocation4 + $0x1] sm:$0x1] %vm753, %v750
    %756 = vst.msk [vmem:[#allocation4 + $0x2] sm:$0x1] %vm753, %v751
    %757 = vst.msk [vmem:[#allocation4 + $0x3] sm:$0x1] %vm753, %v752
    %758 = vst.msk [vmem:[#allocation2] sm:$0x1] %vm552, %v399
    %759 = vst.msk [vmem:[#allocation2 + $0x1] sm:$0x1] %vm552, %v400
    %760 = vst.msk [vmem:[#allocation2 + $0x2] sm:$0x1] %vm552, %v401
    %761 = vst.msk [vmem:[#allocation2 + $0x3] sm:$0x1] %vm552, %v402
    // Predicated region
    $region26: #{tpu_custom_call.1} parent=1 // pred_check
      %p762 = pneg %p32
    $region27: #{tpu_custom_call.1} parent=1 // pred_check_branch
      %764 = sbr.rel (%p762) target = $region29
    $region28: #{tpu_custom_call.1} parent=1 // pred_region
      %v765 = vld [vmem:[#allocation3] sm:$0x1]
      %v766 = vld [vmem:[#allocation3 + $0x1] sm:$0x1]
      %v767 = vld [vmem:[#allocation3 + $0x2] sm:$0x1]
      %v768 = vld [vmem:[#allocation3 + $0x3] sm:$0x1]
      %v769 = vrcp.pop %v765
      %v770 = vrcp.pop %v766
      %v771 = vrcp.pop %v767
      %v772 = vrcp.pop %v768
      %v773 = vld [vmem:[#allocation4] sm:$0x1]
      %v774 = vld [vmem:[#allocation4 + $0x1] sm:$0x1]
      %v775 = vld [vmem:[#allocation4 + $0x2] sm:$0x1]
      %v776 = vld [vmem:[#allocation4 + $0x3] sm:$0x1]
      %778 = vset.pattern.permute.xlu0 0
      %779 = vperm.xlu0 %778, %v769
      %v780 = vpop.permute.xlu0 %779
      %v782 = vlaneseq
      %v783 = vshrl.u32 %v782, 7
      %v784 = vsub.s32 0, %v783
      %v785 = vrot.slane %v780, %v784
      %787 = vset.pattern.permute.xlu0 0
      %788 = vperm.xlu0 %787, %v770
      %v789 = vpop.permute.xlu0 %788
      %v791 = vlaneseq
      %v792 = vshrl.u32 %v791, 7
      %v793 = vsub.s32 0, %v792
      %v794 = vrot.slane %v789, %v793
      %796 = vset.pattern.permute.xlu0 0
      %797 = vperm.xlu0 %796, %v771
      %v798 = vpop.permute.xlu0 %797
      %v800 = vlaneseq
      %v801 = vshrl.u32 %v800, 7
      %v802 = vsub.s32 0, %v801
      %v803 = vrot.slane %v798, %v802
      %805 = vset.pattern.permute.xlu0 0
      %806 = vperm.xlu0 %805, %v772
      %v807 = vpop.permute.xlu0 %806
      %v809 = vlaneseq
      %v810 = vshrl.u32 %v809, 7
      %v811 = vsub.s32 0, %v810
      %v812 = vrot.slane %v807, %v811
      %v813 = vmul.f32 %v773, %v785
      %v814 = vmul.f32 %v774, %v794
      %v815 = vmul.f32 %v775, %v803
      %v816 = vmul.f32 %v776, %v812
      %817 = vst.msk [vmem:[#allocation8] sm:$0x1] %vm753, %v813
      %818 = vst.msk [vmem:[#allocation8 + $0x1] sm:$0x1] %vm753, %v814
      %819 = vst.msk [vmem:[#allocation8 + $0x2] sm:$0x1] %vm753, %v815
      %820 = vst.msk [vmem:[#allocation8 + $0x3] sm:$0x1] %vm753, %v816
    $region29: #{tpu_custom_call.1} parent=1 // pred_fallthru
      _
    // Predicated region
    $region30: #{tpu_custom_call.1} parent=1 // pred_check
      _
    $region31: #{tpu_custom_call.1} parent=1 // pred_check_branch
      %822 = sbr.rel (0) target = $region33
    $region32: #{tpu_custom_call.1} parent=1 // pred_region
      %s824 = ssub.s32 64, 64
      %825 = vsyncadd [#allocation7], %s824
      %s826 = sshll.u32 [#allocation8], 4
      %s827 = int_to_ptr.vmem [resolvable:$true] %s826
      %832 = dma.vmem_to_hbm [thread:$0]  %s827, 64, %s4, [#allocation7], 16, 16, 1
    $region33: #{tpu_custom_call.1} parent=1 // pred_fallthru
      _
    // Predicated region
    $region34: #{tpu_custom_call.1} parent=1 // pred_check
      _
    $region35: #{tpu_custom_call.1} parent=1 // pred_check_branch
      %834 = sbr.rel (0) target = $region37
    $region36: #{tpu_custom_call.1} parent=1 // pred_region
      %835 = dma.done [#allocation7], 64
    $region37: #{tpu_custom_call.1} parent=1 // pred_fallthru
      _
    %836 = vsyncpa [#allocation6], 1
    %837 = vsyncpa [#allocation7], 1

</llo_original>
